<compile_context>
chip_gen: v5e
topology: v5e:2x2
jax: 0.10.0
libtpu: 0.0.40
codegen_flags: <defaults>
</compile_context>

<pallas_src>
import jax
import jax.numpy as jnp
from jax.experimental import pallas as pl
from jax.experimental.pallas import tpu as pltpu


def _vmem_capacity_bytes():
    """Physical VMEM per TensorCore (128 MiB on v5e/v6e, 64 MiB on v7x)."""
    try:
        cap = int(pltpu.get_tpu_info().vmem_capacity_bytes)
        if cap > 0:
            return cap
    except Exception:
        pass
    return 64 * 1024 * 1024          # conservative fallback (v7x per-TC)


def _pa_kernel(x_ref, w1_ref, b1_ref, w2_ref, b2_ref, o_ref):
    # x_ref : (bn, C, T)  spatial tile(s); T pixels on the lane axis
    # w1_ref: (Cr, C)     conv1 weight (== torch conv1.weight[:, :, 0, 0]), x dtype
    # b1_ref: (Cr, 1)     conv1 bias, f32
    # w2_ref: (Cr, 1)     conv2 weight (== torch conv2.weight[0, :, 0, 0]), f32
    # b2_ref: (1,)        conv2 bias (scalar, SMEM), f32
    w1 = w1_ref[...]
    b1 = b1_ref[...]
    w2 = w2_ref[...]
    b2 = b2_ref[0]

    def one_image(b):
        x = x_ref[b]                                              # (C, T)
        # conv1 (1x1): MXU matmul with f32 accumulate, bias, ReLU
        h = jnp.dot(w1, x, preferred_element_type=jnp.float32)    # (Cr, T) f32
        h = jnp.maximum(h + b1, 0.0)
        # conv2 (1x1, 1 output channel): VPU mul + sublane reduction, bias, sigmoid
        y = jnp.sum(h * w2, axis=0, keepdims=True)                # (1, T) f32
        y = jax.nn.sigmoid(y + b2)
        # pixel attention: broadcast y over channels (sublanes), scale in f32
        o_ref[b] = (x.astype(jnp.float32) * y).astype(o_ref.dtype)

    bn = x_ref.shape[0]
    if bn <= 8:                       # static unroll for small per-step batches
        for b in range(bn):
            one_image(b)
    else:
        @pl.loop(0, bn)
        def _(b):
            one_image(b)


def pa_layer(x_nchw, w1, b1, w2, b2, *, tile_byte_budget=None, vmem_limit_bytes=None):
    """PALayer forward.

    x_nchw: (N, C, H, W)
    w1:     (C//8, C)   == torch conv1.weight[:, :, 0, 0]
    b1:     (C//8,)     == torch conv1.bias
    w2:     (C//8,)     == torch conv2.weight[0, :, 0, 0]
    b2:     scalar      == torch conv2.bias[0]
    """
    N, C, H, W = x_nchw.shape
    Cr = w1.shape[0]
    HW = H * W
    itemsize = jnp.dtype(x_nchw.dtype).itemsize

    # Per-generation budgets: x tiles ~8 MiB on v5e/v6e, ~4 MiB on v7x, so the
    # double-buffered in+out footprint (4 * tile) stays at ~1/4 of VMEM.
    vmem_cap = _vmem_capacity_bytes()
    if tile_byte_budget is None:
        tile_byte_budget = min(vmem_cap // 16, 8 * 1024 * 1024)
    if vmem_limit_bytes is None:
        vmem_limit_bytes = min(vmem_cap // 2, 64 * 1024 * 1024)
    vmem_limit_bytes = max(int(vmem_limit_bytes),
                           4 * int(tile_byte_budget) + (2 << 20))

    x3 = x_nchw.reshape(N, C, HW)                    # no transpose, no pad
    w1_x = w1.astype(x_nchw.dtype)                   # cast once in the wrapper
    b1_2d = b1.reshape(Cr, 1).astype(jnp.float32)
    w2_2d = w2.reshape(Cr, 1).astype(jnp.float32)
    b2_1d = jnp.reshape(b2, (1,)).astype(jnp.float32)

    per_image_bytes = C * HW * itemsize

    cost = pl.CostEstimate(
        flops=int(2 * N * HW * Cr * (C + 1) + N * C * HW),
        transcendentals=int(N * HW),
        bytes_accessed=int(2 * N * C * HW * itemsize + (Cr * C + 2 * Cr + 1) * 4),
    )

    if per_image_bytes <= tile_byte_budget:
        # ---- small-feature-map path: batch several images per grid step ----
        bn_cap = max(1, tile_byte_budget // per_image_bytes)
        if N >= 2:
            bn_cap = min(bn_cap, N // 2)     # keep >= 2 grid steps (megacore)
        bn = 1
        for d in range(1, min(bn_cap, N) + 1):
            if N % d == 0:                   # avoid ragged batch blocks
                bn = d
        grid = (N // bn,)
        x_spec = pl.BlockSpec((bn, C, HW), lambda i: (i, 0, 0))
        w1_spec = pl.BlockSpec((Cr, C), lambda i: (0, 0))
        b1_spec = pl.BlockSpec((Cr, 1), lambda i: (0, 0))
        w2_spec = pl.BlockSpec((Cr, 1), lambda i: (0, 0))
        out_spec = pl.BlockSpec((bn, C, HW), lambda i: (i, 0, 0))
        semantics = ("parallel",)
    else:
        # ---- large-feature-map path: tile the spatial (lane) axis ----
        t_max = max(128, (tile_byte_budget // (C * itemsize)) // 128 * 128)
        if HW <= t_max:
            t = HW                           # full extent, single block
        else:
            t = 0
            for cand in range(t_max, 127, -128):
                if HW % cand == 0:           # prefer a tile that divides HW
                    t = cand
                    break
            if t == 0:
                t = t_max                    # ragged last block (lanes masked)
        n_hw = pl.cdiv(HW, t)
        if N * n_hw < 2 and HW >= 256:       # give megacore >= 2 grid steps
            t = (((HW + 1) // 2) + 127) // 128 * 128
            n_hw = pl.cdiv(HW, t)
        grid = (N, n_hw)
        x_spec = pl.BlockSpec((1, C, t), lambda n, j: (n, 0, j))
        w1_spec = pl.BlockSpec((Cr, C), lambda n, j: (0, 0))
        b1_spec = pl.BlockSpec((Cr, 1), lambda n, j: (0, 0))
        w2_spec = pl.BlockSpec((Cr, 1), lambda n, j: (0, 0))
        out_spec = pl.BlockSpec((1, C, t), lambda n, j: (n, 0, j))
        semantics = ("parallel", "parallel")

    out3 = pl.pallas_call(
        _pa_kernel,
        out_shape=jax.ShapeDtypeStruct((N, C, HW), x_nchw.dtype),
        grid_spec=pltpu.PrefetchScalarGridSpec(
            num_scalar_prefetch=0,
            grid=grid,
            in_specs=[
                x_spec,                                           # x tile(s)
                w1_spec,                                          # w1 (resident)
                b1_spec,                                          # b1
                w2_spec,                                          # w2
                pl.BlockSpec(memory_space=pltpu.MemorySpace.SMEM),  # b2 scalar
            ],
            out_specs=out_spec,
        ),
        compiler_params=pltpu.CompilerParams(
            dimension_semantics=semantics,
            vmem_limit_bytes=int(vmem_limit_bytes)),
        cost_estimate=cost,
    )(x3, w1_x, b1_2d, w2_2d, b2_1d)

    return out3.reshape(N, C, H, W)


def _reference(x_nchw, w1, b1, w2, b2):
    # plain-JAX reference of the PyTorch forward, for sanity checking
    x = x_nchw.astype(jnp.float32)
    h = jnp.maximum(jnp.einsum("rc,nchw->nrhw", w1, x)
                    + b1[None, :, None, None], 0.0)
    y = jax.nn.sigmoid(jnp.einsum("r,nrhw->nhw", w2, h)[:, None] + b2)
    return (x * y).astype(x_nchw.dtype)


if __name__ == "__main__":
    def run_case(key, N, C, H, W, **kw):
        # channel must be >= 8 so that channel // 8 >= 1 (as in the PyTorch module)
        Cr = C // 8
        kx, k1, k2, k3, k4 = jax.random.split(key, 5)
        x = jax.random.normal(kx, (N, C, H, W), dtype=jnp.float32)
        # (PyTorch conv shapes: (Cr,C,1,1), (Cr,), (1,Cr,1,1), (1,))
        w1 = jax.random.normal(k1, (Cr, C), dtype=jnp.float32) * 0.1
        b1 = jax.random.normal(k2, (Cr,), dtype=jnp.float32) * 0.1
        w2 = jax.random.normal(k3, (Cr,), dtype=jnp.float32) * 0.1
        b2 = jax.random.normal(k4, (), dtype=jnp.float32) * 0.1
        out = jax.block_until_ready(pa_layer(x, w1, b1, w2, b2, **kw))
        ref = _reference(x, w1, b1, w2, b2)
        assert out.shape == (N, C, H, W)
        assert jnp.allclose(out, ref, atol=1e-5, rtol=1e-5), \
            f"mismatch vs reference for shape {(N, C, H, W)}"

    key = jax.random.PRNGKey(0)
    k0, k1, k2 = jax.random.split(key, 3)

    # primary small case (batched-image path, 2 grid steps)
    run_case(k0, 2, 32, 16, 16)
    # odd spatial extent (H*W not a multiple of 128, full-extent lane block)
    run_case(k1, 2, 16, 13, 11)
    # force the spatial-tiling path (t < H*W) with an artificially small budget
    run_case(k2, 1, 32, 32, 32, tile_byte_budget=64 * 1024)

    print("KERNEL_OK")
</pallas_src>

<mosaic_0001>
module attributes {stable_mosaic.version = 11 : i64} {
  func.func @_pa_kernel(%arg0: i32, %arg1: memref<1x32x256xf32, #tpu.memory_space<vmem>>, %arg2: memref<4x32xf32, #tpu.memory_space<vmem>>, %arg3: memref<4x1xf32, #tpu.memory_space<vmem>>, %arg4: memref<4x1xf32, #tpu.memory_space<vmem>>, %arg5: memref<1xf32, #tpu.memory_space<smem>>, %arg6: memref<1x32x256xf32, #tpu.memory_space<vmem>>) attributes {dimension_semantics = [#tpu.dimension_semantics<parallel>], iteration_bounds = array<i64: 2>, scalar_prefetch = 0 : i64, scratch_operands = 0 : i64, tpu.core_type = #tpu.core_type<tc>, window_params = [{transform_indices = @transform_0, window_bounds = array<i64: 1, 32, 256>}, {pipeline_mode = #tpu.pipeline_mode<synchronous>, transform_indices = @transform_1, window_bounds = array<i64: 4, 32>}, {pipeline_mode = #tpu.pipeline_mode<synchronous>, transform_indices = @transform_2, window_bounds = array<i64: 4, 1>}, {pipeline_mode = #tpu.pipeline_mode<synchronous>, transform_indices = @transform_3, window_bounds = array<i64: 4, 1>}, {transform_indices = @transform_4, window_bounds = array<i64: 1>}, {transform_indices = @transform_5, window_bounds = array<i64: 1, 32, 256>}]} {
    %c0 = arith.constant 0 : index
    %c0_0 = arith.constant 0 : index
    %0 = vector.load %arg2[%c0, %c0_0] : memref<4x32xf32, #tpu.memory_space<vmem>>, vector<4x32xf32>
    %c0_1 = arith.constant 0 : index
    %c0_2 = arith.constant 0 : index
    %1 = vector.load %arg3[%c0_1, %c0_2] : memref<4x1xf32, #tpu.memory_space<vmem>>, vector<4x1xf32>
    %c0_3 = arith.constant 0 : index
    %c0_4 = arith.constant 0 : index
    %2 = vector.load %arg4[%c0_3, %c0_4] : memref<4x1xf32, #tpu.memory_space<vmem>>, vector<4x1xf32>
    %c0_5 = arith.constant 0 : index
    %3 = memref.load %arg5[%c0_5] : memref<1xf32, #tpu.memory_space<smem>>
    %c0_6 = arith.constant 0 : index
    %c0_7 = arith.constant 0 : index
    %c0_8 = arith.constant 0 : index
    %4 = vector.load %arg1[%c0_6, %c0_7, %c0_8] : memref<1x32x256xf32, #tpu.memory_space<vmem>>, vector<1x32x256xf32>
    %5 = vector.shape_cast %4 : vector<1x32x256xf32> to vector<32x256xf32>
    %cst = arith.constant dense<0.000000e+00> : vector<4x256xf32>
    %6 = tpu.matmul %0, %5, %cst {dimension_numbers = #tpu.dot_dimension_numbers<[1], [0], [0], [1], [0, 0, 1, 1], [], []>} : vector<4x32xf32>, vector<32x256xf32>, vector<4x256xf32> -> vector<4x256xf32>
    %7 = vector.broadcast %1 : vector<4x1xf32> to vector<4x256xf32>
    %8 = arith.addf %6, %7 : vector<4x256xf32>
    %cst_9 = arith.constant 0.000000e+00 : f32
    %9 = vector.broadcast %cst_9 : f32 to vector<4x256xf32>
    %10 = arith.maximumf %8, %9 : vector<4x256xf32>
    %11 = vector.broadcast %2 : vector<4x1xf32> to vector<4x256xf32>
    %12 = arith.mulf %10, %11 : vector<4x256xf32>
    %cst_10 = arith.constant dense<0.000000e+00> : vector<256xf32>
    %13 = vector.multi_reduction <add>, %12, %cst_10 [0] : vector<4x256xf32> to vector<256xf32>
    %14 = vector.shape_cast %13 : vector<256xf32> to vector<1x256xf32>
    %15 = vector.broadcast %3 : f32 to vector<1x256xf32>
    %16 = arith.addf %14, %15 : vector<1x256xf32>
    %17 = arith.negf %16 : vector<1x256xf32>
    %18 = math.exp %17 : vector<1x256xf32>
    %cst_11 = arith.constant 1.000000e+00 : f32
    %19 = vector.broadcast %cst_11 : f32 to vector<1x256xf32>
    %20 = arith.addf %19, %18 : vector<1x256xf32>
    %21 = arith.divf %19, %20 : vector<1x256xf32>
    %22 = vector.broadcast %21 : vector<1x256xf32> to vector<32x256xf32>
    %23 = arith.mulf %5, %22 : vector<32x256xf32>
    %c0_12 = arith.constant 0 : index
    %c0_13 = arith.constant 0 : index
    %c0_14 = arith.constant 0 : index
    %24 = vector.load %arg6[%c0_12, %c0_13, %c0_14] : memref<1x32x256xf32, #tpu.memory_space<vmem>>, vector<1x32x256xf32>
    %25 = vector.shape_cast %24 : vector<1x32x256xf32> to vector<32x256xf32>
    %26 = vector.shape_cast %23 : vector<32x256xf32> to vector<1x32x256xf32>
    tpu.vector_store %arg6[%c0_12, %c0_13, %c0_14], %26 {strides = array<i32>} : memref<1x32x256xf32, #tpu.memory_space<vmem>>, vector<1x32x256xf32>,
    return
  }
  func.func @transform_0(%arg0: i32) -> (i32, i32, i32) {
    %c0_i32 = arith.constant 0 : i32
    %c0_i32_0 = arith.constant 0 : i32
    %c0_i32_1 = arith.constant 0 : i32
    return %arg0, %c0_i32, %c0_i32_0 : i32, i32, i32
  }
  func.func @transform_1(%arg0: i32) -> (i32, i32) {
    %c0_i32 = arith.constant 0 : i32
    %c0_i32_0 = arith.constant 0 : i32
    %c0_i32_1 = arith.constant 0 : i32
    return %c0_i32, %c0_i32_0 : i32, i32
  }
  func.func @transform_2(%arg0: i32) -> (i32, i32) {
    %c0_i32 = arith.constant 0 : i32
    %c0_i32_0 = arith.constant 0 : i32
    %c0_i32_1 = arith.constant 0 : i32
    return %c0_i32, %c0_i32_0 : i32, i32
  }
  func.func @transform_3(%arg0: i32) -> (i32, i32) {
    %c0_i32 = arith.constant 0 : i32
    %c0_i32_0 = arith.constant 0 : i32
    %c0_i32_1 = arith.constant 0 : i32
    return %c0_i32, %c0_i32_0 : i32, i32
  }
  func.func @transform_4(%arg0: i32) -> i32 {
    %c0_i32 = arith.constant 0 : i32
    %c0_i32_0 = arith.constant 0 : i32
    return %c0_i32 : i32
  }
  func.func @transform_5(%arg0: i32) -> (i32, i32, i32) {
    %c0_i32 = arith.constant 0 : i32
    %c0_i32_0 = arith.constant 0 : i32
    %c0_i32_1 = arith.constant 0 : i32
    return %arg0, %c0_i32, %c0_i32_0 : i32, i32, i32
  }
}

</mosaic_0001>

<llo_original>
// kernel: tpu_custom_call.1
$region0: #{tpu_custom_call.1}
  #allocation0 [shape = 'u32[]', space=smem, size = 0x4, offset = 0x4, fixed_abs, tag = 'smem constant byte address 0x4 - core index']
  #allocation1 [shape = 'u32[72,128]{1,0:T(1,128)}', space=vmem, size = 0x9000, scoped, tag = 'internal scratch']
  #allocation2 [shape = 'f32[1]{0:T(128)S(6)}', space=smem, size = 0x200, scoped, tag = 'scoped memory for tpu_custom_call.1']
  %s0 = inlined_call_operand.hbm [shape: f32[2,32,256], index: 0, kind: input, shape index: {}]
  %s1 = inlined_call_operand.vmem [shape: f32[4,32], index: 1, kind: input, shape index: {}]
  %s2 = inlined_call_operand.vmem [shape: f32[4,1], index: 2, kind: input, shape index: {}]
  %s3 = inlined_call_operand.vmem [shape: f32[4,1], index: 3, kind: input, shape index: {}]
  %s4 = inlined_call_operand.<no memory space> [shape: f32[1], index: 4, kind: input, shape index: {}]
  %s5 = inlined_call_operand.hbm [shape: f32[2,32,256], index: 5, kind: output, shape index: {}]
  %s6 = sld [smem:[#allocation0]]
  $region57: #{tpu_custom_call.1} parent=0
    _
  %s8 = ssub.s32 1, %s6
  %s9 = scalar_select 0, %s8, %s6
  %10 = sst [smem:[#allocation2]] %s4
  $region1: #{tpu_custom_call.1} parent=0
    #allocation3 [shape = 'u8[65536]{0}', space=vmem, size = 0x10000, scoped, tag = 'input window, operand 0']
    #allocation4 [shape = 's32[2]{0}', space=sflag, size = 0x8, scoped, tag = 'scoped memory for tpu_custom_call.1']
    #allocation5 [shape = 's32[2]{0}', space=sflag, size = 0x8, scoped, tag = 'scoped memory for tpu_custom_call.1']
    #allocation6 [shape = 'u8[65536]{0}', space=vmem, size = 0x10000, scoped, tag = 'output window, operand 0']
    %11 = vsyncpa [#allocation4], 0
    %s12 = scalar_lea.sflag [#allocation4], 1
    %13 = vsyncpa %s12, 0
    %14 = vsyncpa [#allocation5], 0
    %s15 = scalar_lea.sflag [#allocation5], 1
    %16 = vsyncpa %s15, 0
    loop: start=0, step=1, limit=4
    $region2: #{tpu_custom_call.1} parent=1 // loop_pre_header
      _
    $region3: #{tpu_custom_call.1} parent=1 // loop_header
      %s18 = sphi 0, %s22
      %p19 = scmp.ge.s32.totalorder %s18, 4
      %s28 = sphi 0, %s30
      %s31 = sphi 0, %s28
      %s32 = sphi 0, %s31
      %s48 = sphi 0, %s32
      %s52 = sphi 0, %s52
      %s54 = sphi 0, %s52
      %s55 = sphi 0, %s54
      %s69 = sphi 0, %s55
      %s73 = sphi 0, %s73
      %s75 = sphi 0, %s73
      %s76 = sphi 0, %s75
      %s90 = sphi 0, %s76
      %s94 = sphi 0, %s94
      %s96 = sphi 0, %s94
      %s97 = sphi 0, %s96
      %s111 = sphi 0, %s97
      %s115 = sphi 0, %s115
      %s117 = sphi 0, %s115
      %s118 = sphi 0, %s117
      %s132 = sphi 0, %s118
      %s138 = sphi 0, %s140
      %s141 = sphi 0, %s138
      %s142 = sphi 0, %s141
      %s158 = sphi 0, %s142
    $region4: #{tpu_custom_call.1} parent=1 // loop_header_branch
      %21 = sbr.rel (%p19) target = $region8
    $region5: #{tpu_custom_call.1} parent=1 // loop_body
      %s23 = ssub.s32 %s18, 1
      %s24 = ssub.s32 %s18, 2
      %s25 = sadd.s32 %s18, 1
      %s26 = ssub.s32 %s18, %s25
      %p27 = scmp.eq.s32.totalorder %s26, 0
      %s29 = sadd.s32 %s28, 1
      %s30 = scalar_select %p27, %s28, %s29
      %p33 = pneg %p27
      %p34 = scmp.eq.s32.totalorder %s18, 1
      %p35 = por %p33, %p34
      %p36 = scmp.ne.s32.totalorder %s28, %s31
      %p37 = scmp.eq.s32.totalorder %s18, 0
      %p38 = por %p36, %p37
      %p39 = scmp.ne.s32.totalorder %s28, %s31
      %p40 = scmp.eq.s32.totalorder %s23, 1
      %p41 = por %p39, %p40
      %p42 = scmp.ne.s32.totalorder %s31, %s32
      %p43 = scmp.eq.s32.totalorder %s23, 0
      %p44 = por %p42, %p43
      %p45 = scmp.ne.s32.totalorder %s31, %s32
      %p46 = scmp.eq.s32.totalorder %s24, 1
      %p47 = por %p45, %p46
      %p49 = scmp.ne.s32.totalorder %s32, %s48
      %p50 = scmp.eq.s32.totalorder %s24, 0
      %p51 = por %p49, %p50
      %s53 = sadd.s32 %s52, 1
      %p56 = scmp.eq.s32.totalorder %s18, 1
      %p57 = scmp.ne.s32.totalorder %s52, %s54
      %p58 = scmp.eq.s32.totalorder %s18, 0
      %p59 = por %p57, %p58
      %p60 = scmp.ne.s32.totalorder %s52, %s54
      %p61 = scmp.eq.s32.totalorder %s23, 1
      %p62 = por %p60, %p61
      %p63 = scmp.ne.s32.totalorder %s54, %s55
      %p64 = scmp.eq.s32.totalorder %s23, 0
      %p65 = por %p63, %p64
      %p66 = scmp.ne.s32.totalorder %s54, %s55
      %p67 = scmp.eq.s32.totalorder %s24, 1
      %p68 = por %p66, %p67
      %p70 = scmp.ne.s32.totalorder %s55, %s69
      %p71 = scmp.eq.s32.totalorder %s24, 0
      %p72 = por %p70, %p71
      %s74 = sadd.s32 %s73, 1
      %p77 = scmp.eq.s32.totalorder %s18, 1
      %p78 = scmp.ne.s32.totalorder %s73, %s75
      %p79 = scmp.eq.s32.totalorder %s18, 0
      %p80 = por %p78, %p79
      %p81 = scmp.ne.s32.totalorder %s73, %s75
      %p82 = scmp.eq.s32.totalorder %s23, 1
      %p83 = por %p81, %p82
      %p84 = scmp.ne.s32.totalorder %s75, %s76
      %p85 = scmp.eq.s32.totalorder %s23, 0
      %p86 = por %p84, %p85
      %p87 = scmp.ne.s32.totalorder %s75, %s76
      %p88 = scmp.eq.s32.totalorder %s24, 1
      %p89 = por %p87, %p88
      %p91 = scmp.ne.s32.totalorder %s76, %s90
      %p92 = scmp.eq.s32.totalorder %s24, 0
      %p93 = por %p91, %p92
      %s95 = sadd.s32 %s94, 1
      %p98 = scmp.eq.s32.totalorder %s18, 1
      %p99 = scmp.ne.s32.totalorder %s94, %s96
      %p100 = scmp.eq.s32.totalorder %s18, 0
      %p101 = por %p99, %p100
      %p102 = scmp.ne.s32.totalorder %s94, %s96
      %p103 = scmp.eq.s32.totalorder %s23, 1
      %p104 = por %p102, %p103
      %p105 = scmp.ne.s32.totalorder %s96, %s97
      %p106 = scmp.eq.s32.totalorder %s23, 0
      %p107 = por %p105, %p106
      %p108 = scmp.ne.s32.totalorder %s96, %s97
      %p109 = scmp.eq.s32.totalorder %s24, 1
      %p110 = por %p108, %p109
      %p112 = scmp.ne.s32.totalorder %s97, %s111
      %p113 = scmp.eq.s32.totalorder %s24, 0
      %p114 = por %p112, %p113
      %s116 = sadd.s32 %s115, 1
      %p119 = scmp.eq.s32.totalorder %s18, 1
      %p120 = scmp.ne.s32.totalorder %s115, %s117
      %p121 = scmp.eq.s32.totalorder %s18, 0
      %p122 = por %p120, %p121
      %p123 = scmp.ne.s32.totalorder %s115, %s117
      %p124 = scmp.eq.s32.totalorder %s23, 1
      %p125 = por %p123, %p124
      %p126 = scmp.ne.s32.totalorder %s117, %s118
      %p127 = scmp.eq.s32.totalorder %s23, 0
      %p128 = por %p126, %p127
      %p129 = scmp.ne.s32.totalorder %s117, %s118
      %p130 = scmp.eq.s32.totalorder %s24, 1
      %p131 = por %p129, %p130
      %p133 = scmp.ne.s32.totalorder %s118, %s132
      %p134 = scmp.eq.s32.totalorder %s24, 0
      %p135 = por %p133, %p134
      %s136 = ssub.s32 %s18, %s25
      %p137 = scmp.eq.s32.totalorder %s136, 0
      %s139 = sadd.s32 %s138, 1
      %s140 = scalar_select %p137, %s138, %s139
      %p143 = pneg %p137
      %p144 = scmp.eq.s32.totalorder %s18, 1
      %p145 = por %p143, %p144
      %p146 = scmp.ne.s32.totalorder %s138, %s141
      %p147 = scmp.eq.s32.totalorder %s18, 0
      %p148 = por %p146, %p147
      %p149 = scmp.ne.s32.totalorder %s138, %s141
      %p150 = scmp.eq.s32.totalorder %s23, 1
      %p151 = por %p149, %p150
      %p152 = scmp.ne.s32.totalorder %s141, %s142
      %p153 = scmp.eq.s32.totalorder %s23, 0
      %p154 = por %p152, %p153
      %p155 = scmp.ne.s32.totalorder %s141, %s142
      %p156 = scmp.eq.s32.totalorder %s24, 1
      %p157 = por %p155, %p156
      %p159 = scmp.ne.s32.totalorder %s142, %s158
      %p160 = scmp.eq.s32.totalorder %s24, 0
      %p161 = por %p159, %p160
      %p162 = scmp.le.s32.totalorder 1, %s18
      %p163 = scmp.lt.s32.totalorder %s18, 3
      %p164 = pnand %p162, %p163
      %p165 = pneg %p164
      // Predicated region
      $region9: #{tpu_custom_call.1} parent=5 // pred_check
        _
      $region10: #{tpu_custom_call.1} parent=5 // pred_check_branch
        %167 = sbr.rel (%p164) target = $region12
      $region11: #{tpu_custom_call.1} parent=5 // pred_region
        %s168 = ssub.s32 %s18, 1
        // Predicated region
        $region13: #{tpu_custom_call.1} parent=11 // pred_check
          %p169 = pneg %p65
        $region14: #{tpu_custom_call.1} parent=11 // pred_check_branch
          %171 = sbr.rel (%p169) target = $region16
        $region15: #{tpu_custom_call.1} parent=11 // pred_region
          _
        $region16: #{tpu_custom_call.1} parent=11 // pred_fallthru
          _
        // Predicated region
        $region17: #{tpu_custom_call.1} parent=11 // pred_check
          %p172 = pneg %p86
        $region18: #{tpu_custom_call.1} parent=11 // pred_check_branch
          %174 = sbr.rel (%p172) target = $region20
        $region19: #{tpu_custom_call.1} parent=11 // pred_region
          _
        $region20: #{tpu_custom_call.1} parent=11 // pred_fallthru
          _
        // Predicated region
        $region21: #{tpu_custom_call.1} parent=11 // pred_check
          %p175 = pneg %p107
        $region22: #{tpu_custom_call.1} parent=11 // pred_check_branch
          %177 = sbr.rel (%p175) target = $region24
        $region23: #{tpu_custom_call.1} parent=11 // pred_region
          _
        $region24: #{tpu_custom_call.1} parent=11 // pred_fallthru
          _
        // Predicated region
        $region25: #{tpu_custom_call.1} parent=11 // pred_check
          %p178 = pneg %p128
        $region26: #{tpu_custom_call.1} parent=11 // pred_check_branch
          %180 = sbr.rel (%p178) target = $region28
        $region27: #{tpu_custom_call.1} parent=11 // pred_region
          _
        $region28: #{tpu_custom_call.1} parent=11 // pred_fallthru
          _
      $region12: #{tpu_custom_call.1} parent=5 // pred_fallthru
        _
      %p181 = scmp.lt.s32.totalorder %s18, 2
      // Predicated region
      $region29: #{tpu_custom_call.1} parent=5 // pred_check
        %p182 = pneg %p181
      $region30: #{tpu_custom_call.1} parent=5 // pred_check_branch
        %184 = sbr.rel (%p182) target = $region32
      $region31: #{tpu_custom_call.1} parent=5 // pred_region
        // Predicated region
        $region33: #{tpu_custom_call.1} parent=31 // pred_check
          %p185 = pneg %p38
        $region34: #{tpu_custom_call.1} parent=31 // pred_check_branch
          %187 = sbr.rel (%p185) target = $region36
        $region35: #{tpu_custom_call.1} parent=31 // pred_region
          %s188 = sand.u32 %s28, 1
          %s189 = scalar_lea.sflag [#allocation4], %s188
          %s190 = sand.u32 %s28, 1
          %s191 = smul.addr %s190, 64
          %s192 = scalar_lea.vmem [#allocation3], %s191
          %194 = vsyncadd %s189, 0
          %s195 = smul.addr %s18, 8
          %s196 = smul.addr %s195, 8
          %s197 = scalar_lea.hbm %s0, %s196
          %s198 = sshll.u32 %s197, 4
          %s199 = int_to_ptr.hbm [resolvable:$true] %s198
          %s200 = sshll.u32 %s192, 4
          %s201 = int_to_ptr.vmem [resolvable:$true] %s200
          %206 = dma.hbm_to_vmem [thread:$0]  %s199, 1024, %s201, %s189, 256, 256, 16
        $region36: #{tpu_custom_call.1} parent=31 // pred_fallthru
          _
      $region32: #{tpu_custom_call.1} parent=5 // pred_fallthru
        _
      %p207 = scmp.le.s32.totalorder 1, %s18
      %p208 = scmp.lt.s32.totalorder %s18, 3
      %p209 = pnand %p207, %p208
      %p210 = pneg %p209
      // Predicated region
      $region37: #{tpu_custom_call.1} parent=5 // pred_check
        _
      $region38: #{tpu_custom_call.1} parent=5 // pred_check_branch
        %212 = sbr.rel (%p209) target = $region40
      $region39: #{tpu_custom_call.1} parent=5 // pred_region
        %s213 = ssub.s32 %s18, 1
        %s214 = sand.u32 %s31, 1
        %s215 = scalar_lea.sflag [#allocation4], %s214
        %s216 = sand.u32 %s31, 1
        %s217 = smul.addr %s216, 64
        %s218 = scalar_lea.vmem [#allocation3], %s217
        // Predicated region
        $region41: #{tpu_custom_call.1} parent=39 // pred_check
          %p219 = pneg %p44
        $region42: #{tpu_custom_call.1} parent=39 // pred_check_branch
          %221 = sbr.rel (%p219) target = $region44
        $region43: #{tpu_custom_call.1} parent=39 // pred_region
          %223 = dma.done %s215, 1024
        $region44: #{tpu_custom_call.1} parent=39 // pred_fallthru
          _
        %s224 = sand.u32 %s31, 1
        %s225 = scalar_lea.sflag [#allocation4], %s224
        %s226 = sand.u32 %s31, 1
        %s227 = smul.addr %s226, 64
        %s228 = scalar_lea.vmem [#allocation3], %s227
        %p229 = pneg %p44
        %p230 = pneg %p41
        %p231 = pneg %p65
        %p232 = pneg %p62
        %p233 = pneg %p86
        %p234 = pneg %p83
        %p235 = pneg %p107
        %p236 = pneg %p104
        %p237 = pneg %p128
        %p238 = pneg %p125
        %p239 = pneg %p154
        %p240 = pneg %p151
        %s241 = sand.u32 %s141, 1
        %s242 = scalar_lea.sflag [#allocation5], %s241
        %s243 = sand.u32 %s141, 1
        %s244 = smul.addr %s243, 64
        %s245 = scalar_lea.vmem [#allocation6], %s244
        %v246 = vld [vmem:[%s1] sm:$0xf]
        %v247 = vld [vmem:[%s2] sm:$0xf]
        %v248 = vld [vmem:[%s3] sm:$0xf]
        %s249 = sld [smem:[#allocation2]]
        %v250 = vld [vmem:[%s218] sm:$0xff]
        %v251 = vld [vmem:[%s218 + $0x8] sm:$0xff]
        %v252 = vld [vmem:[%s218 + $0x10] sm:$0xff]
        %v253 = vld [vmem:[%s218 + $0x18] sm:$0xff]
        %v254 = vld [vmem:[%s218 + $0x20] sm:$0xff]
        %v255 = vld [vmem:[%s218 + $0x28] sm:$0xff]
        %v256 = vld [vmem:[%s218 + $0x30] sm:$0xff]
        %v257 = vld [vmem:[%s218 + $0x38] sm:$0xff]
        %259 = vset.pattern.permute.xlu0 0
        %260 = vperm.xlu0 %259, %v247
        %v261 = vpop.permute.xlu0 %260
        %vm263 = vcmask 261120
        %v265 = vsel %vm263, %v246, 0
        %267 = vmatpush.msra.mxu0 0.0
        %268 = vmatpush.msra.mxu0 0.0
        %269 = vmatpush.msra.mxu0 0.0
        %270 = vmatpush.msra.mxu0 0.0
        %271 = vmatpush.msra.mxu0 0.0
        %272 = vmatpush.msra.mxu0 0.0
        %273 = vmatpush.msra.mxu0 0.0
        %274 = vmatpush.msra.mxu0 0.0
        %275 = vmatpush.msra.mxu0 0.0
        %276 = vmatpush.msra.mxu0 0.0
        %277 = vmatpush.msra.mxu0 0.0
        %278 = vmatpush.msra.mxu0 0.0
        %279 = vmatpush.msra.mxu0 %v256
        %280 = vmatpush.msra.mxu0 %v254
        %281 = vmatpush.msra.mxu0 %v252
        %282 = vmatpush.msra.mxu0 %v250
        %283 = vmatmul.f32.gmra.mxu0 %v265
        %v284 = vpop.f32.mrf.mxu0
        %v285 = vadd.f32 %v261, %v284
        %286 = vdwg.mxu0
        %287 = vmatpush.msra.mxu0 0.0
        %288 = vmatpush.msra.mxu0 0.0
        %289 = vmatpush.msra.mxu0 0.0
        %290 = vmatpush.msra.mxu0 0.0
        %291 = vmatpush.msra.mxu0 0.0
        %292 = vmatpush.msra.mxu0 0.0
        %293 = vmatpush.msra.mxu0 0.0
        %294 = vmatpush.msra.mxu0 0.0
        %295 = vmatpush.msra.mxu0 0.0
        %296 = vmatpush.msra.mxu0 0.0
        %297 = vmatpush.msra.mxu0 0.0
        %298 = vmatpush.msra.mxu0 0.0
        %299 = vmatpush.msra.mxu0 %v257
        %300 = vmatpush.msra.mxu0 %v255
        %301 = vmatpush.msra.mxu0 %v253
        %302 = vmatpush.msra.mxu0 %v251
        %303 = vmatmul.f32.gmra.mxu0 %v265
        %v304 = vpop.f32.mrf.mxu0
        %v305 = vadd.f32 %v261, %v304
        %306 = vdwg.mxu0
        %v307 = vmax.f32 %v285, 0.0
        %v308 = vmax.f32 %v305, 0.0
        %310 = vset.pattern.permute.xlu0 0
        %311 = vperm.xlu0 %310, %v248
        %v312 = vpop.permute.xlu0 %311
        %v314 = vmul.f32 %v307, %v312
        %v315 = vmul.f32 %v308, %v312
        %vm316 = vcmask 1043456
        %v317 = vsel %vm316, %v314, 0.0
        %v318 = vrot.slane %v317, 4
        %v319 = vadd.f32 %v317, %v318
        %v320 = vrot.slane %v319, 2
        %v321 = vadd.f32 %v319, %v320
        %v322 = vrot.slane %v321, 1
        %v323 = vadd.f32 %v321, %v322
        %v324 = vsel %vm316, %v315, 0.0
        %v325 = vrot.slane %v324, 4
        %v326 = vadd.f32 %v324, %v325
        %v327 = vrot.slane %v326, 2
        %v328 = vadd.f32 %v326, %v327
        %v329 = vrot.slane %v328, 1
        %v330 = vadd.f32 %v328, %v329
        %v331 = vstv %s249
        %v332 = vadd.f32 %v323, %v331
        %v333 = vadd.f32 %v330, %v331
        %v334 = vxor.u32 %v332, 2147483648
        %v335 = vxor.u32 %v333, 2147483648
        %v336 = vmul.f32 %v334, 1.442695
        %v337 = vpow.pop %v336
        %v338 = vmul.f32 %v335, 1.442695
        %v339 = vpow.pop %v338
        %v340 = vadd.f32 %v337, 1.0
        %v341 = vadd.f32 %v339, 1.0
        %v342 = vrcp.pop %v340
        %v343 = vmul.f32 %v340, %v342
        %v344 = vsub.f32 1.0, %v343
        %v345 = vmul.f32 %v342, %v344
        %v346 = vadd.f32 %v342, %v345
        %vm347 = vweird.f32 %v340
        %vm348 = vweird.f32 %v342
        %vm349 = vmor %vm347, %vm348
        %v350 = vsel %vm349, %v342, %v346
        %v351 = vand.u32 2147483647, %v340
        %vm352 = vcmp.eq.f32.partialorder %v351, 8.507059e+37
        %v353 = vand.u32 %v340, 2147483648
        %v354 = vor.u32 1.1754944e-38, %v353
        %v355 = vsel %vm352, %v354, %v350
        %v356 = vmul.f32 1.0, %v355
        %v357 = vrcp.pop %v341
        %v358 = vmul.f32 %v341, %v357
        %v359 = vsub.f32 1.0, %v358
        %v360 = vmul.f32 %v357, %v359
        %v361 = vadd.f32 %v357, %v360
        %vm362 = vweird.f32 %v341
        %vm363 = vweird.f32 %v357
        %vm364 = vmor %vm362, %vm363
        %v365 = vsel %vm364, %v357, %v361
        %v366 = vand.u32 2147483647, %v341
        %vm367 = vcmp.eq.f32.partialorder %v366, 8.507059e+37
        %v368 = vand.u32 %v341, 2147483648
        %v369 = vor.u32 1.1754944e-38, %v368
        %v370 = vsel %vm367, %v369, %v365
        %v371 = vmul.f32 1.0, %v370
        %v372 = vmul.f32 %v250, %v356
        %v373 = vmul.f32 %v251, %v371
        %v374 = vmul.f32 %v252, %v356
        %v375 = vmul.f32 %v253, %v371
        %v376 = vmul.f32 %v254, %v356
        %v377 = vmul.f32 %v255, %v371
        %v378 = vmul.f32 %v256, %v356
        %v379 = vmul.f32 %v257, %v371
        %380 = vst [vmem:[%s245] sm:$0xff] %v372
        %381 = vst [vmem:[%s245 + $0x8] sm:$0xff] %v373
        %382 = vst [vmem:[%s245 + $0x10] sm:$0xff] %v374
        %383 = vst [vmem:[%s245 + $0x18] sm:$0xff] %v375
        %384 = vst [vmem:[%s245 + $0x20] sm:$0xff] %v376
        %385 = vst [vmem:[%s245 + $0x28] sm:$0xff] %v377
        %386 = vst [vmem:[%s245 + $0x30] sm:$0xff] %v378
        %387 = vst [vmem:[%s245 + $0x38] sm:$0xff] %v379
        %s388 = sand.u32 %s141, 1
        %s389 = scalar_lea.sflag [#allocation5], %s388
        %s390 = sand.u32 %s141, 1
        %s391 = smul.addr %s390, 64
        %s392 = scalar_lea.vmem [#allocation6], %s391
        // Predicated region
        $region45: #{tpu_custom_call.1} parent=39 // pred_check
          %p393 = pneg %p151
        $region46: #{tpu_custom_call.1} parent=39 // pred_check_branch
          %395 = sbr.rel (%p393) target = $region48
        $region47: #{tpu_custom_call.1} parent=39 // pred_region
          %397 = vsyncadd %s389, 0
          %s398 = smul.addr %s23, 8
          %s399 = smul.addr %s398, 8
          %s400 = scalar_lea.hbm %s5, %s399
          %s401 = sshll.u32 %s392, 4
          %s402 = int_to_ptr.vmem [resolvable:$true] %s401
          %s403 = sshll.u32 %s400, 4
          %s404 = int_to_ptr.hbm [resolvable:$true] %s403
          %409 = dma.vmem_to_hbm [thread:$0]  %s402, 1024, %s404, %s389, 256, 256, 16
        $region48: #{tpu_custom_call.1} parent=39 // pred_fallthru
          _
      $region40: #{tpu_custom_call.1} parent=5 // pred_fallthru
        _
      %p410 = scmp.le.s32.totalorder 2, %s18
      // Predicated region
      $region49: #{tpu_custom_call.1} parent=5 // pred_check
        %p411 = pneg %p410
      $region50: #{tpu_custom_call.1} parent=5 // pred_check_branch
        %413 = sbr.rel (%p411) target = $region52
      $region51: #{tpu_custom_call.1} parent=5 // pred_region
        %s414 = ssub.s32 %s18, 2
        // Predicated region
        $region53: #{tpu_custom_call.1} parent=51 // pred_check
          %p415 = pneg %p157
        $region54: #{tpu_custom_call.1} parent=51 // pred_check_branch
          %417 = sbr.rel (%p415) target = $region56
        $region55: #{tpu_custom_call.1} parent=51 // pred_region
          %s418 = sand.u32 %s142, 1
          %s419 = scalar_lea.sflag [#allocation5], %s418
          %s420 = sand.u32 %s142, 1
          %s421 = smul.addr %s420, 64
          %s422 = scalar_lea.vmem [#allocation6], %s421
          %424 = dma.done %s419, 1024
        $region56: #{tpu_custom_call.1} parent=51 // pred_fallthru
          _
      $region52: #{tpu_custom_call.1} parent=5 // pred_fallthru
        _
    $region6: #{tpu_custom_call.1} parent=1 // loop_footer
      %s22 = sadd.s32 1, %s18
    $region7: #{tpu_custom_call.1} parent=1 // loop_footer_branch
      %17 = sbr.rel target = $region3
    $region8: #{tpu_custom_call.1} parent=1 // loop_exit
      _
    %425 = vsyncpa [#allocation4], 1
    %s426 = scalar_lea.sflag [#allocation4], 1
    %427 = vsyncpa %s426, 1
    %428 = vsyncpa [#allocation5], 1
    %s429 = scalar_lea.sflag [#allocation5], 1
    %430 = vsyncpa %s429, 1

</llo_original>
